<compile_context>
chip_gen: v6e
topology: v6e:2x2x1
jax: 0.10.0
libtpu: 0.0.40
codegen_flags: <defaults>
</compile_context>

<pallas_src>
import functools

import jax
import jax.numpy as jnp
from jax.experimental import pallas as pl
from jax.experimental.pallas import tpu as pltpu


def _round_up(a, b):
    return (a + b - 1) // b * b


def _cdiv(a, b):
    return -(-a // b)


def _choose_tile_b(B, tile_b_max):
    """Pick the batch tile.

    - B <= 16: single block equal to the full batch dim (full-dim block exception,
      no divisibility constraint, no OOB rows for the tiny demo case).
    - otherwise: aim for >= 2 grid steps (v7x megacore) with a 16-aligned tile
      (bf16 sublane pack), capped at tile_b_max.
    """
    if B <= 16:
        return B
    return min(tile_b_max, _round_up(_cdiv(B, 2), 16))


def mlp_kernel(x_ref, w1_ref, b1_ref, w2_ref, b2_ref, w3_ref, b3_ref, o_ref):
    # x arrives in native f32; cast to bf16 in-kernel (no HBM pre-pass), MXU matmuls
    # accumulate in f32, bias-add + ReLU in f32, downcast once per layer.
    x = x_ref[...].astype(jnp.bfloat16)
    h1 = jnp.dot(x, w1_ref[...], preferred_element_type=jnp.float32) + b1_ref[...]
    h1 = jnp.maximum(h1, 0.0).astype(jnp.bfloat16)
    h2 = jnp.dot(h1, w2_ref[...], preferred_element_type=jnp.float32) + b2_ref[...]
    h2 = jnp.maximum(h2, 0.0).astype(jnp.bfloat16)
    y = jnp.dot(h2, w3_ref[...], preferred_element_type=jnp.float32) + b3_ref[...]
    o_ref[...] = y.astype(o_ref.dtype)  # lane-dense 128-wide bf16 store


@functools.partial(jax.jit, static_argnames=("tile_b_max",))
def mlp_forward(x, params, tile_b_max=1024):
    """x: (B, C, H, W) or (B, input_size). Returns (B, output_size) in f32."""
    w1, b1, w2, b2, w3, b3 = params
    B = x.shape[0]
    in_size, hidden = w1.shape
    out_size = w3.shape[1]

    h_pad = max(128, _round_up(hidden, 128))    # 200 -> 256
    o_pad = max(128, _round_up(out_size, 128))  # 10  -> 128

    x2d = x.reshape(B, -1)                      # x.view(B, -1); native dtype, no copy pass
    assert x2d.shape[1] == in_size

    tile_b = _choose_tile_b(B, tile_b_max)
    grid = (pl.cdiv(B, tile_b),)

    # Zero-pad params to lane-aligned widths (K stays at 784: full-dim block exception).
    # Weights -> bf16 (MXU operands), biases -> f32 (added to the f32 accumulator).
    w1p = jnp.zeros((in_size, h_pad), jnp.bfloat16).at[:, :hidden].set(w1.astype(jnp.bfloat16))
    b1p = jnp.zeros((1, h_pad), jnp.float32).at[:, :hidden].set(b1.reshape(1, -1).astype(jnp.float32))
    w2p = jnp.zeros((h_pad, h_pad), jnp.bfloat16).at[:hidden, :hidden].set(w2.astype(jnp.bfloat16))
    b2p = jnp.zeros((1, h_pad), jnp.float32).at[:, :hidden].set(b2.reshape(1, -1).astype(jnp.float32))
    w3p = jnp.zeros((h_pad, o_pad), jnp.bfloat16).at[:hidden, :out_size].set(w3.astype(jnp.bfloat16))
    b3p = jnp.zeros((1, o_pad), jnp.float32).at[:, :out_size].set(b3.reshape(1, -1).astype(jnp.float32))

    itemsize = jnp.dtype(x2d.dtype).itemsize
    flops = 2 * B * (in_size * h_pad + h_pad * h_pad + h_pad * o_pad)
    bytes_accessed = (
        B * in_size * itemsize + B * o_pad * 2
        + (in_size * h_pad + h_pad * h_pad + h_pad * o_pad) * 2
        + (2 * h_pad + o_pad) * 4)

    out = pl.pallas_call(
        mlp_kernel,
        out_shape=jax.ShapeDtypeStruct((B, o_pad), jnp.bfloat16),
        grid=grid,
        in_specs=[
            pl.BlockSpec((tile_b, in_size), lambda i: (i, 0)),   # x: streamed per batch tile (f32)
            pl.BlockSpec((in_size, h_pad), lambda i: (0, 0)),    # w1: VMEM-resident
            pl.BlockSpec((1, h_pad), lambda i: (0, 0)),          # b1: resident
            pl.BlockSpec((h_pad, h_pad), lambda i: (0, 0)),      # w2: resident
            pl.BlockSpec((1, h_pad), lambda i: (0, 0)),          # b2: resident
            pl.BlockSpec((h_pad, o_pad), lambda i: (0, 0)),      # w3: resident
            pl.BlockSpec((1, o_pad), lambda i: (0, 0)),          # b3: resident
        ],
        out_specs=pl.BlockSpec((tile_b, o_pad), lambda i: (i, 0)),  # lane-dense bf16 output
        compiler_params=pltpu.CompilerParams(
            dimension_semantics=("parallel",)),
        cost_estimate=pl.CostEstimate(
            flops=flops, transcendentals=0, bytes_accessed=bytes_accessed),
    )(x2d, w1p, b1p, w2p, b2p, w3p, b3p)

    return out[:, :out_size].astype(jnp.float32)


def init_params(key, input_size=784, hidden=200, output_size=10):
    """Deterministic init mimicking nn.Linear default: U(-1/sqrt(fan_in), 1/sqrt(fan_in)).
    Weights stored as (in, out); biases as (1, out)."""
    ks = jax.random.split(key, 6)

    def linear(kw, kb, fan_in, fan_out):
        bound = 1.0 / jnp.sqrt(jnp.float32(fan_in))
        w = jax.random.uniform(kw, (fan_in, fan_out), jnp.float32, -bound, bound)
        b = jax.random.uniform(kb, (1, fan_out), jnp.float32, -bound, bound)
        return w, b

    w1, b1 = linear(ks[0], ks[1], input_size, hidden)
    w2, b2 = linear(ks[2], ks[3], hidden, hidden)
    w3, b3 = linear(ks[4], ks[5], hidden, output_size)
    return (w1, b1, w2, b2, w3, b3)


def mlp_reference(x, params):
    """Pure-JAX f32 reference for correctness checking."""
    w1, b1, w2, b2, w3, b3 = params
    x2d = x.reshape(x.shape[0], -1).astype(jnp.float32)
    h1 = jnp.maximum(x2d @ w1 + b1, 0.0)
    h2 = jnp.maximum(h1 @ w2 + b2, 0.0)
    return h2 @ w3 + b3


if __name__ == "__main__":
    key = jax.random.PRNGKey(0)
    k_x, k_p = jax.random.split(key)

    # MNIST-style input consistent with input_size=784: (B=2, C=1, H=28, W=28).
    x = jax.random.normal(k_x, (2, 1, 28, 28), dtype=jnp.float32)
    params = init_params(k_p, input_size=784, hidden=200, output_size=10)

    out = mlp_forward(x, params)
    out = jax.block_until_ready(out)

    ref = mlp_reference(x, params)
    assert out.shape == (2, 10)
    # bf16 MXU operands + bf16 output store with f32 accumulation -> loose tolerance vs f32 ref.
    assert jnp.allclose(out, ref, atol=3e-2, rtol=3e-2), "mismatch vs reference"

    print("KERNEL_OK")
</pallas_src>

<mosaic_0001>
module attributes {stable_mosaic.version = 11 : i64} {
  func.func @mlp_kernel(%arg0: i32, %arg1: memref<2x784xf32, #tpu.memory_space<vmem>>, %arg2: memref<784x256xbf16, #tpu.memory_space<vmem>>, %arg3: memref<1x256xf32, #tpu.memory_space<vmem>>, %arg4: memref<256x256xbf16, #tpu.memory_space<vmem>>, %arg5: memref<1x256xf32, #tpu.memory_space<vmem>>, %arg6: memref<256x128xbf16, #tpu.memory_space<vmem>>, %arg7: memref<1x128xf32, #tpu.memory_space<vmem>>, %arg8: memref<2x128xbf16, #tpu.memory_space<vmem>>) attributes {dimension_semantics = [#tpu.dimension_semantics<parallel>], iteration_bounds = array<i64: 1>, scalar_prefetch = 0 : i64, scratch_operands = 0 : i64, tpu.core_type = #tpu.core_type<tc>, window_params = [{transform_indices = @transform_0, window_bounds = array<i64: 2, 784>}, {pipeline_mode = #tpu.pipeline_mode<synchronous>, transform_indices = @transform_1, window_bounds = array<i64: 784, 256>}, {pipeline_mode = #tpu.pipeline_mode<synchronous>, transform_indices = @transform_2, window_bounds = array<i64: 1, 256>}, {pipeline_mode = #tpu.pipeline_mode<synchronous>, transform_indices = @transform_3, window_bounds = array<i64: 256, 256>}, {pipeline_mode = #tpu.pipeline_mode<synchronous>, transform_indices = @transform_4, window_bounds = array<i64: 1, 256>}, {pipeline_mode = #tpu.pipeline_mode<synchronous>, transform_indices = @transform_5, window_bounds = array<i64: 256, 128>}, {pipeline_mode = #tpu.pipeline_mode<synchronous>, transform_indices = @transform_6, window_bounds = array<i64: 1, 128>}, {transform_indices = @transform_7, window_bounds = array<i64: 2, 128>}]} {
    %c0 = arith.constant 0 : index
    %c0_0 = arith.constant 0 : index
    %0 = vector.load %arg1[%c0, %c0_0] : memref<2x784xf32, #tpu.memory_space<vmem>>, vector<2x784xf32>
    %1 = arith.truncf %0 : vector<2x784xf32> to vector<2x784xbf16>
    %c0_1 = arith.constant 0 : index
    %c0_2 = arith.constant 0 : index
    %2 = vector.load %arg2[%c0_1, %c0_2] : memref<784x256xbf16, #tpu.memory_space<vmem>>, vector<784x256xbf16>
    %cst = arith.constant dense<0.000000e+00> : vector<2x256xf32>
    %3 = tpu.matmul %1, %2, %cst {dimension_numbers = #tpu.dot_dimension_numbers<[1], [0], [0], [1], [0, 0, 1, 1], [], []>} : vector<2x784xbf16>, vector<784x256xbf16>, vector<2x256xf32> -> vector<2x256xf32>
    %c0_3 = arith.constant 0 : index
    %c0_4 = arith.constant 0 : index
    %4 = vector.load %arg3[%c0_3, %c0_4] : memref<1x256xf32, #tpu.memory_space<vmem>>, vector<1x256xf32>
    %5 = vector.broadcast %4 : vector<1x256xf32> to vector<2x256xf32>
    %6 = arith.addf %3, %5 : vector<2x256xf32>
    %cst_5 = arith.constant 0.000000e+00 : f32
    %7 = vector.broadcast %cst_5 : f32 to vector<2x256xf32>
    %8 = arith.maximumf %6, %7 : vector<2x256xf32>
    %9 = arith.truncf %8 : vector<2x256xf32> to vector<2x256xbf16>
    %c0_6 = arith.constant 0 : index
    %c0_7 = arith.constant 0 : index
    %10 = vector.load %arg4[%c0_6, %c0_7] : memref<256x256xbf16, #tpu.memory_space<vmem>>, vector<256x256xbf16>
    %cst_8 = arith.constant dense<0.000000e+00> : vector<2x256xf32>
    %11 = tpu.matmul %9, %10, %cst_8 {dimension_numbers = #tpu.dot_dimension_numbers<[1], [0], [0], [1], [0, 0, 1, 1], [], []>} : vector<2x256xbf16>, vector<256x256xbf16>, vector<2x256xf32> -> vector<2x256xf32>
    %c0_9 = arith.constant 0 : index
    %c0_10 = arith.constant 0 : index
    %12 = vector.load %arg5[%c0_9, %c0_10] : memref<1x256xf32, #tpu.memory_space<vmem>>, vector<1x256xf32>
    %13 = vector.broadcast %12 : vector<1x256xf32> to vector<2x256xf32>
    %14 = arith.addf %11, %13 : vector<2x256xf32>
    %cst_11 = arith.constant 0.000000e+00 : f32
    %15 = vector.broadcast %cst_11 : f32 to vector<2x256xf32>
    %16 = arith.maximumf %14, %15 : vector<2x256xf32>
    %17 = arith.truncf %16 : vector<2x256xf32> to vector<2x256xbf16>
    %c0_12 = arith.constant 0 : index
    %c0_13 = arith.constant 0 : index
    %18 = vector.load %arg6[%c0_12, %c0_13] : memref<256x128xbf16, #tpu.memory_space<vmem>>, vector<256x128xbf16>
    %cst_14 = arith.constant dense<0.000000e+00> : vector<2x128xf32>
    %19 = tpu.matmul %17, %18, %cst_14 {dimension_numbers = #tpu.dot_dimension_numbers<[1], [0], [0], [1], [0, 0, 1, 1], [], []>} : vector<2x256xbf16>, vector<256x128xbf16>, vector<2x128xf32> -> vector<2x128xf32>
    %c0_15 = arith.constant 0 : index
    %c0_16 = arith.constant 0 : index
    %20 = vector.load %arg7[%c0_15, %c0_16] : memref<1x128xf32, #tpu.memory_space<vmem>>, vector<1x128xf32>
    %21 = vector.broadcast %20 : vector<1x128xf32> to vector<2x128xf32>
    %22 = arith.addf %19, %21 : vector<2x128xf32>
    %23 = arith.truncf %22 : vector<2x128xf32> to vector<2x128xbf16>
    %c0_17 = arith.constant 0 : index
    %c0_18 = arith.constant 0 : index
    %24 = vector.load %arg8[%c0_17, %c0_18] : memref<2x128xbf16, #tpu.memory_space<vmem>>, vector<2x128xbf16>
    tpu.vector_store %arg8[%c0_17, %c0_18], %23 {strides = array<i32>} : memref<2x128xbf16, #tpu.memory_space<vmem>>, vector<2x128xbf16>,
    return
  }
  func.func @transform_0(%arg0: i32) -> (i32, i32) {
    %c0_i32 = arith.constant 0 : i32
    %c0_i32_0 = arith.constant 0 : i32
    return %arg0, %c0_i32 : i32, i32
  }
  func.func @transform_1(%arg0: i32) -> (i32, i32) {
    %c0_i32 = arith.constant 0 : i32
    %c0_i32_0 = arith.constant 0 : i32
    %c0_i32_1 = arith.constant 0 : i32
    return %c0_i32, %c0_i32_0 : i32, i32
  }
  func.func @transform_2(%arg0: i32) -> (i32, i32) {
    %c0_i32 = arith.constant 0 : i32
    %c0_i32_0 = arith.constant 0 : i32
    %c0_i32_1 = arith.constant 0 : i32
    return %c0_i32, %c0_i32_0 : i32, i32
  }
  func.func @transform_3(%arg0: i32) -> (i32, i32) {
    %c0_i32 = arith.constant 0 : i32
    %c0_i32_0 = arith.constant 0 : i32
    %c0_i32_1 = arith.constant 0 : i32
    return %c0_i32, %c0_i32_0 : i32, i32
  }
  func.func @transform_4(%arg0: i32) -> (i32, i32) {
    %c0_i32 = arith.constant 0 : i32
    %c0_i32_0 = arith.constant 0 : i32
    %c0_i32_1 = arith.constant 0 : i32
    return %c0_i32, %c0_i32_0 : i32, i32
  }
  func.func @transform_5(%arg0: i32) -> (i32, i32) {
    %c0_i32 = arith.constant 0 : i32
    %c0_i32_0 = arith.constant 0 : i32
    %c0_i32_1 = arith.constant 0 : i32
    return %c0_i32, %c0_i32_0 : i32, i32
  }
  func.func @transform_6(%arg0: i32) -> (i32, i32) {
    %c0_i32 = arith.constant 0 : i32
    %c0_i32_0 = arith.constant 0 : i32
    %c0_i32_1 = arith.constant 0 : i32
    return %c0_i32, %c0_i32_0 : i32, i32
  }
  func.func @transform_7(%arg0: i32) -> (i32, i32) {
    %c0_i32 = arith.constant 0 : i32
    %c0_i32_0 = arith.constant 0 : i32
    return %arg0, %c0_i32 : i32, i32
  }
}

</mosaic_0001>

<llo_original>
// kernel: mlp_forward.1
$region0: #{mlp_forward.1}
  #allocation0 [shape = 'u32[]', space=smem, size = 0x4, offset = 0x4, fixed_abs, tag = 'smem constant byte address 0x4 - core index']
  #allocation1 [shape = 'u32[144,128]{1,0:T(1,128)}', space=vmem, size = 0x12000, scoped, tag = 'internal scratch']
  %s0 = inlined_call_operand.vmem [shape: f32[2,784], index: 0, kind: input, shape index: {}]
  %s1 = inlined_call_operand.vmem [shape: bf16[784,256], index: 1, kind: input, shape index: {}]
  %s2 = inlined_call_operand.vmem [shape: f32[1,256], index: 2, kind: input, shape index: {}]
  %s3 = inlined_call_operand.vmem [shape: bf16[256,256], index: 3, kind: input, shape index: {}]
  %s4 = inlined_call_operand.vmem [shape: f32[1,256], index: 4, kind: input, shape index: {}]
  %s5 = inlined_call_operand.vmem [shape: bf16[256,128], index: 5, kind: input, shape index: {}]
  %s6 = inlined_call_operand.vmem [shape: f32[1,128], index: 6, kind: input, shape index: {}]
  %s7 = inlined_call_operand.vmem [shape: bf16[2,128], index: 7, kind: output, shape index: {}]
  %s8 = sld [smem:[#allocation0]]
  $region38: #{mlp_forward.1} parent=0
    _
  %s10 = ssub.s32 1, %s8
  %s11 = scalar_select 0, %s10, %s8
  // Predicated region
  $region2: #{mlp_forward.1} parent=0 // pred_check
    _
  $region3: #{mlp_forward.1} parent=0 // pred_check_branch
    %13 = sbr.rel (0) target = $region5
  $region4: #{mlp_forward.1} parent=0 // pred_region
    _
  $region5: #{mlp_forward.1} parent=0 // pred_fallthru
    _
  // Predicated region
  $region6: #{mlp_forward.1} parent=0 // pred_check
    _
  $region7: #{mlp_forward.1} parent=0 // pred_check_branch
    %15 = sbr.rel (0) target = $region9
  $region8: #{mlp_forward.1} parent=0 // pred_region
    _
  $region9: #{mlp_forward.1} parent=0 // pred_fallthru
    _
  // Predicated region
  $region10: #{mlp_forward.1} parent=0 // pred_check
    _
  $region11: #{mlp_forward.1} parent=0 // pred_check_branch
    %17 = sbr.rel (0) target = $region13
  $region12: #{mlp_forward.1} parent=0 // pred_region
    _
  $region13: #{mlp_forward.1} parent=0 // pred_fallthru
    _
  // Predicated region
  $region14: #{mlp_forward.1} parent=0 // pred_check
    _
  $region15: #{mlp_forward.1} parent=0 // pred_check_branch
    %19 = sbr.rel (0) target = $region17
  $region16: #{mlp_forward.1} parent=0 // pred_region
    _
  $region17: #{mlp_forward.1} parent=0 // pred_fallthru
    _
  // Predicated region
  $region18: #{mlp_forward.1} parent=0 // pred_check
    _
  $region19: #{mlp_forward.1} parent=0 // pred_check_branch
    %21 = sbr.rel (0) target = $region21
  $region20: #{mlp_forward.1} parent=0 // pred_region
    _
  $region21: #{mlp_forward.1} parent=0 // pred_fallthru
    _
  // Predicated region
  $region22: #{mlp_forward.1} parent=0 // pred_check
    _
  $region23: #{mlp_forward.1} parent=0 // pred_check_branch
    %23 = sbr.rel (0) target = $region25
  $region24: #{mlp_forward.1} parent=0 // pred_region
    _
  $region25: #{mlp_forward.1} parent=0 // pred_fallthru
    _
  // Predicated region
  $region26: #{mlp_forward.1} parent=0 // pred_check
    _
  $region27: #{mlp_forward.1} parent=0 // pred_check_branch
    %25 = sbr.rel (0) target = $region29
  $region28: #{mlp_forward.1} parent=0 // pred_region
    _
  $region29: #{mlp_forward.1} parent=0 // pred_fallthru
    _
  %v27 = vld [vmem:[%s0] sm:$0xff]
  %v28 = vld [vmem:[%s0 + $0x8] sm:$0x3f]
  %v31 = vcombine.high %v27, %v27
  %v33 = vunpack.c.l.s4 1983009808
  %v34 = vunpack.c.0.s8 %v33
  %v35 = vlaneseq
  %v36 = vshrl.u32 %v35, 7
  %v37 = vsub.s32 %v34, %v36
  %v38 = vrot.slane %v27, %v37
  %v40 = vunpack.c.l.s4 1983009808
  %v41 = vunpack.c.0.s8 %v40
  %v42 = vlaneseq
  %v43 = vshrl.u32 %v42, 7
  %v44 = vsub.s32 %v41, %v43
  %v45 = vrot.slane %v31, %v44
  %v46 = vcombine.high %v38, %v38
  %v47 = vcombine.high %v45, %v45
  %v48 = vcombine.high %v28, %v28
  %v50 = vunpack.c.l.s4 1983009808
  %v51 = vunpack.c.0.s8 %v50
  %v52 = vlaneseq
  %v53 = vshrl.u32 %v52, 7
  %v54 = vsub.s32 %v51, %v53
  %v55 = vrot.slane %v28, %v54
  %v57 = vunpack.c.l.s4 1983009808
  %v58 = vunpack.c.0.s8 %v57
  %v59 = vlaneseq
  %v60 = vshrl.u32 %v59, 7
  %v61 = vsub.s32 %v58, %v60
  %v62 = vrot.slane %v48, %v61
  %v63 = vcombine.high %v55, %v55
  %v71 = vpack.c.bf16 %v38, %v38
  %v72 = vpack.c.bf16 %v46, %v46
  %v73 = vpack.c.bf16 %v45, %v45
  %v74 = vpack.c.bf16 %v47, %v47
  %v75 = vpack.c.bf16 %v55, %v55
  %v76 = vpack.c.bf16 %v63, %v63
  %v77 = vpack.c.bf16 %v62, %v62
  %v78 = vld [vmem:[%s1] sm:$0xff]
  %v79 = vld [vmem:[%s1 + $0x8] sm:$0xff]
  %v80 = vld [vmem:[%s1 + $0x10] sm:$0xff]
  %v81 = vld [vmem:[%s1 + $0x18] sm:$0xff]
  %v82 = vld [vmem:[%s1 + $0x20] sm:$0xff]
  %v83 = vld [vmem:[%s1 + $0x28] sm:$0xff]
  %v84 = vld [vmem:[%s1 + $0x30] sm:$0xff]
  %v85 = vld [vmem:[%s1 + $0x38] sm:$0xff]
  %v86 = vld [vmem:[%s1 + $0x40] sm:$0xff]
  %v87 = vld [vmem:[%s1 + $0x48] sm:$0xff]
  %v88 = vld [vmem:[%s1 + $0x50] sm:$0xff]
  %v89 = vld [vmem:[%s1 + $0x58] sm:$0xff]
  %v90 = vld [vmem:[%s1 + $0x60] sm:$0xff]
  %v91 = vld [vmem:[%s1 + $0x68] sm:$0xff]
  %v92 = vld [vmem:[%s1 + $0x70] sm:$0xff]
  %v93 = vld [vmem:[%s1 + $0x78] sm:$0xff]
  %v94 = vld [vmem:[%s1 + $0x80] sm:$0xff]
  %v95 = vld [vmem:[%s1 + $0x88] sm:$0xff]
  %v96 = vld [vmem:[%s1 + $0x90] sm:$0xff]
  %v97 = vld [vmem:[%s1 + $0x98] sm:$0xff]
  %v98 = vld [vmem:[%s1 + $0xa0] sm:$0xff]
  %v99 = vld [vmem:[%s1 + $0xa8] sm:$0xff]
  %v100 = vld [vmem:[%s1 + $0xb0] sm:$0xff]
  %v101 = vld [vmem:[%s1 + $0xb8] sm:$0xff]
  %v102 = vld [vmem:[%s1 + $0xc0] sm:$0xff]
  %v103 = vld [vmem:[%s1 + $0xc8] sm:$0xff]
  %v104 = vld [vmem:[%s1 + $0xd0] sm:$0xff]
  %v105 = vld [vmem:[%s1 + $0xd8] sm:$0xff]
  %v106 = vld [vmem:[%s1 + $0xe0] sm:$0xff]
  %v107 = vld [vmem:[%s1 + $0xe8] sm:$0xff]
  %v108 = vld [vmem:[%s1 + $0xf0] sm:$0xff]
  %v109 = vld [vmem:[%s1 + $0xf8] sm:$0xff]
  %v110 = vld [vmem:[%s1 + $0x100] sm:$0xff]
  %v111 = vld [vmem:[%s1 + $0x108] sm:$0xff]
  %v112 = vld [vmem:[%s1 + $0x110] sm:$0xff]
  %v113 = vld [vmem:[%s1 + $0x118] sm:$0xff]
  %v114 = vld [vmem:[%s1 + $0x120] sm:$0xff]
  %v115 = vld [vmem:[%s1 + $0x128] sm:$0xff]
  %v116 = vld [vmem:[%s1 + $0x130] sm:$0xff]
  %v117 = vld [vmem:[%s1 + $0x138] sm:$0xff]
  %v118 = vld [vmem:[%s1 + $0x140] sm:$0xff]
  %v119 = vld [vmem:[%s1 + $0x148] sm:$0xff]
  %v120 = vld [vmem:[%s1 + $0x150] sm:$0xff]
  %v121 = vld [vmem:[%s1 + $0x158] sm:$0xff]
  %v122 = vld [vmem:[%s1 + $0x160] sm:$0xff]
  %v123 = vld [vmem:[%s1 + $0x168] sm:$0xff]
  %v124 = vld [vmem:[%s1 + $0x170] sm:$0xff]
  %v125 = vld [vmem:[%s1 + $0x178] sm:$0xff]
  %v126 = vld [vmem:[%s1 + $0x180] sm:$0xff]
  %v127 = vld [vmem:[%s1 + $0x188] sm:$0xff]
  %v128 = vld [vmem:[%s1 + $0x190] sm:$0xff]
  %v129 = vld [vmem:[%s1 + $0x198] sm:$0xff]
  %v130 = vld [vmem:[%s1 + $0x1a0] sm:$0xff]
  %v131 = vld [vmem:[%s1 + $0x1a8] sm:$0xff]
  %v132 = vld [vmem:[%s1 + $0x1b0] sm:$0xff]
  %v133 = vld [vmem:[%s1 + $0x1b8] sm:$0xff]
  %v134 = vld [vmem:[%s1 + $0x1c0] sm:$0xff]
  %v135 = vld [vmem:[%s1 + $0x1c8] sm:$0xff]
  %v136 = vld [vmem:[%s1 + $0x1d0] sm:$0xff]
  %v137 = vld [vmem:[%s1 + $0x1d8] sm:$0xff]
  %v138 = vld [vmem:[%s1 + $0x1e0] sm:$0xff]
  %v139 = vld [vmem:[%s1 + $0x1e8] sm:$0xff]
  %v140 = vld [vmem:[%s1 + $0x1f0] sm:$0xff]
  %v141 = vld [vmem:[%s1 + $0x1f8] sm:$0xff]
  %v142 = vld [vmem:[%s1 + $0x200] sm:$0xff]
  %v143 = vld [vmem:[%s1 + $0x208] sm:$0xff]
  %v144 = vld [vmem:[%s1 + $0x210] sm:$0xff]
  %v145 = vld [vmem:[%s1 + $0x218] sm:$0xff]
  %v146 = vld [vmem:[%s1 + $0x220] sm:$0xff]
  %v147 = vld [vmem:[%s1 + $0x228] sm:$0xff]
  %v148 = vld [vmem:[%s1 + $0x230] sm:$0xff]
  %v149 = vld [vmem:[%s1 + $0x238] sm:$0xff]
  %v150 = vld [vmem:[%s1 + $0x240] sm:$0xff]
  %v151 = vld [vmem:[%s1 + $0x248] sm:$0xff]
  %v152 = vld [vmem:[%s1 + $0x250] sm:$0xff]
  %v153 = vld [vmem:[%s1 + $0x258] sm:$0xff]
  %v154 = vld [vmem:[%s1 + $0x260] sm:$0xff]
  %v155 = vld [vmem:[%s1 + $0x268] sm:$0xff]
  %v156 = vld [vmem:[%s1 + $0x270] sm:$0xff]
  %v157 = vld [vmem:[%s1 + $0x278] sm:$0xff]
  %v158 = vld [vmem:[%s1 + $0x280] sm:$0xff]
  %v159 = vld [vmem:[%s1 + $0x288] sm:$0xff]
  %v160 = vld [vmem:[%s1 + $0x290] sm:$0xff]
  %v161 = vld [vmem:[%s1 + $0x298] sm:$0xff]
  %v162 = vld [vmem:[%s1 + $0x2a0] sm:$0xff]
  %v163 = vld [vmem:[%s1 + $0x2a8] sm:$0xff]
  %v164 = vld [vmem:[%s1 + $0x2b0] sm:$0xff]
  %v165 = vld [vmem:[%s1 + $0x2b8] sm:$0xff]
  %v166 = vld [vmem:[%s1 + $0x2c0] sm:$0xff]
  %v167 = vld [vmem:[%s1 + $0x2c8] sm:$0xff]
  %v168 = vld [vmem:[%s1 + $0x2d0] sm:$0xff]
  %v169 = vld [vmem:[%s1 + $0x2d8] sm:$0xff]
  %v170 = vld [vmem:[%s1 + $0x2e0] sm:$0xff]
  %v171 = vld [vmem:[%s1 + $0x2e8] sm:$0xff]
  %v172 = vld [vmem:[%s1 + $0x2f0] sm:$0xff]
  %v173 = vld [vmem:[%s1 + $0x2f8] sm:$0xff]
  %v174 = vld [vmem:[%s1 + $0x300] sm:$0xff]
  %v175 = vld [vmem:[%s1 + $0x308] sm:$0xff]
  %v176 = vld [vmem:[%s2] sm:$0x3]
  %v178 = vlaneseq
  %v179 = vshrl.u32 %v178, 7
  %v180 = vsub.s32 0, %v179
  %v181 = vrot.slane %v176, %v180
  %v182 = vlaneseq
  %v183 = vshrl.u32 %v182, 7
  %v184 = vsub.s32 1, %v183
  %v185 = vrot.slane %v176, %v184
  %v286 = vunpack.c.l.b16 %v78
  %v287 = vunpack.c.h.b16 %v78
  %v288 = vunpack.c.l.b16 %v79
  %v289 = vunpack.c.h.b16 %v79
  %v290 = vunpack.c.l.b16 %v80
  %v291 = vunpack.c.h.b16 %v80
  %v292 = vunpack.c.l.b16 %v81
  %v293 = vunpack.c.h.b16 %v81
  %v294 = vunpack.c.l.b16 %v82
  %v295 = vunpack.c.h.b16 %v82
  %v296 = vunpack.c.l.b16 %v83
  %v297 = vunpack.c.h.b16 %v83
  %v298 = vunpack.c.l.b16 %v84
  %v299 = vunpack.c.h.b16 %v84
  %v300 = vunpack.c.l.b16 %v85
  %v301 = vunpack.c.h.b16 %v85
  %v302 = vunpack.c.l.b16 %v86
  %v303 = vunpack.c.h.b16 %v86
  %v304 = vunpack.c.l.b16 %v87
  %v305 = vunpack.c.h.b16 %v87
  %v306 = vunpack.c.l.b16 %v88
  %v307 = vunpack.c.h.b16 %v88
  %v308 = vunpack.c.l.b16 %v89
  %v309 = vunpack.c.h.b16 %v89
  %v310 = vunpack.c.l.b16 %v90
  %v311 = vunpack.c.h.b16 %v90
  %v312 = vunpack.c.l.b16 %v91
  %v313 = vunpack.c.h.b16 %v91
  %v314 = vunpack.c.l.b16 %v92
  %v315 = vunpack.c.h.b16 %v92
  %v316 = vunpack.c.l.b16 %v93
  %v317 = vunpack.c.h.b16 %v93
  %v318 = vunpack.c.l.b16 %v94
  %v319 = vunpack.c.h.b16 %v94
  %v320 = vunpack.c.l.b16 %v95
  %v321 = vunpack.c.h.b16 %v95
  %v322 = vunpack.c.l.b16 %v96
  %v323 = vunpack.c.h.b16 %v96
  %v324 = vunpack.c.l.b16 %v97
  %v325 = vunpack.c.h.b16 %v97
  %v326 = vunpack.c.l.b16 %v98
  %v327 = vunpack.c.h.b16 %v98
  %v328 = vunpack.c.l.b16 %v99
  %v329 = vunpack.c.h.b16 %v99
  %v330 = vunpack.c.l.b16 %v100
  %v331 = vunpack.c.h.b16 %v100
  %v332 = vunpack.c.l.b16 %v101
  %v333 = vunpack.c.h.b16 %v101
  %v334 = vunpack.c.l.b16 %v102
  %v335 = vunpack.c.h.b16 %v102
  %v336 = vunpack.c.l.b16 %v103
  %v337 = vunpack.c.h.b16 %v103
  %v338 = vunpack.c.l.b16 %v104
  %v339 = vunpack.c.h.b16 %v104
  %v340 = vunpack.c.l.b16 %v105
  %v341 = vunpack.c.h.b16 %v105
  %v342 = vunpack.c.l.b16 %v106
  %v343 = vunpack.c.h.b16 %v106
  %v344 = vunpack.c.l.b16 %v107
  %v345 = vunpack.c.h.b16 %v107
  %v346 = vunpack.c.l.b16 %v108
  %v347 = vunpack.c.h.b16 %v108
  %v348 = vunpack.c.l.b16 %v109
  %v349 = vunpack.c.h.b16 %v109
  %v350 = vunpack.c.l.b16 %v110
  %v351 = vunpack.c.h.b16 %v110
  %v352 = vunpack.c.l.b16 %v111
  %v353 = vunpack.c.h.b16 %v111
  %v354 = vunpack.c.l.b16 %v112
  %v355 = vunpack.c.h.b16 %v112
  %v356 = vunpack.c.l.b16 %v113
  %v357 = vunpack.c.h.b16 %v113
  %v358 = vunpack.c.l.b16 %v114
  %v359 = vunpack.c.h.b16 %v114
  %v360 = vunpack.c.l.b16 %v115
  %v361 = vunpack.c.h.b16 %v115
  %v362 = vunpack.c.l.b16 %v116
  %v363 = vunpack.c.h.b16 %v116
  %v364 = vunpack.c.l.b16 %v117
  %v365 = vunpack.c.h.b16 %v117
  %v366 = vunpack.c.l.b16 %v118
  %v367 = vunpack.c.h.b16 %v118
  %v368 = vunpack.c.l.b16 %v119
  %v369 = vunpack.c.h.b16 %v119
  %v370 = vunpack.c.l.b16 %v120
  %v371 = vunpack.c.h.b16 %v120
  %v372 = vunpack.c.l.b16 %v121
  %v373 = vunpack.c.h.b16 %v121
  %v374 = vunpack.c.l.b16 %v122
  %v375 = vunpack.c.h.b16 %v122
  %v376 = vunpack.c.l.b16 %v123
  %v377 = vunpack.c.h.b16 %v123
  %v378 = vunpack.c.l.b16 %v124
  %v379 = vunpack.c.h.b16 %v124
  %v380 = vunpack.c.l.b16 %v125
  %v381 = vunpack.c.h.b16 %v125
  %v382 = vunpack.c.l.b16 %v126
  %v383 = vunpack.c.h.b16 %v126
  %v384 = vunpack.c.l.b16 %v127
  %v385 = vunpack.c.h.b16 %v127
  %v386 = vunpack.c.l.b16 %v128
  %v387 = vunpack.c.h.b16 %v128
  %v388 = vunpack.c.l.b16 %v129
  %v389 = vunpack.c.h.b16 %v129
  %v390 = vunpack.c.l.b16 %v130
  %v391 = vunpack.c.h.b16 %v130
  %v392 = vunpack.c.l.b16 %v131
  %v393 = vunpack.c.h.b16 %v131
  %v394 = vunpack.c.l.b16 %v132
  %v395 = vunpack.c.h.b16 %v132
  %v396 = vunpack.c.l.b16 %v133
  %v397 = vunpack.c.h.b16 %v133
  %v398 = vunpack.c.l.b16 %v134
  %v399 = vunpack.c.h.b16 %v134
  %v400 = vunpack.c.l.b16 %v135
  %v401 = vunpack.c.h.b16 %v135
  %v402 = vunpack.c.l.b16 %v136
  %v403 = vunpack.c.h.b16 %v136
  %v404 = vunpack.c.l.b16 %v137
  %v405 = vunpack.c.h.b16 %v137
  %v406 = vunpack.c.l.b16 %v138
  %v407 = vunpack.c.h.b16 %v138
  %v408 = vunpack.c.l.b16 %v139
  %v409 = vunpack.c.h.b16 %v139
  %v410 = vunpack.c.l.b16 %v140
  %v411 = vunpack.c.h.b16 %v140
  %v412 = vunpack.c.l.b16 %v141
  %v413 = vunpack.c.h.b16 %v141
  %v414 = vunpack.c.l.b16 %v142
  %v415 = vunpack.c.h.b16 %v142
  %v416 = vunpack.c.l.b16 %v143
  %v417 = vunpack.c.h.b16 %v143
  %v418 = vunpack.c.l.b16 %v144
  %v419 = vunpack.c.h.b16 %v144
  %v420 = vunpack.c.l.b16 %v145
  %v421 = vunpack.c.h.b16 %v145
  %v422 = vunpack.c.l.b16 %v146
  %v423 = vunpack.c.h.b16 %v146
  %v424 = vunpack.c.l.b16 %v147
  %v425 = vunpack.c.h.b16 %v147
  %v426 = vunpack.c.l.b16 %v148
  %v427 = vunpack.c.h.b16 %v148
  %v428 = vunpack.c.l.b16 %v149
  %v429 = vunpack.c.h.b16 %v149
  %v430 = vunpack.c.l.b16 %v150
  %v431 = vunpack.c.h.b16 %v150
  %v432 = vunpack.c.l.b16 %v151
  %v433 = vunpack.c.h.b16 %v151
  %v434 = vunpack.c.l.b16 %v152
  %v435 = vunpack.c.h.b16 %v152
  %v436 = vunpack.c.l.b16 %v153
  %v437 = vunpack.c.h.b16 %v153
  %v438 = vunpack.c.l.b16 %v154
  %v439 = vunpack.c.h.b16 %v154
  %v440 = vunpack.c.l.b16 %v155
  %v441 = vunpack.c.h.b16 %v155
  %v442 = vunpack.c.l.b16 %v156
  %v443 = vunpack.c.h.b16 %v156
  %v444 = vunpack.c.l.b16 %v157
  %v445 = vunpack.c.h.b16 %v157
  %v446 = vunpack.c.l.b16 %v158
  %v447 = vunpack.c.h.b16 %v158
  %v448 = vunpack.c.l.b16 %v159
  %v449 = vunpack.c.h.b16 %v159
  %v450 = vunpack.c.l.b16 %v160
  %v451 = vunpack.c.h.b16 %v160
  %v452 = vunpack.c.l.b16 %v161
  %v453 = vunpack.c.h.b16 %v161
  %v454 = vunpack.c.l.b16 %v162
  %v455 = vunpack.c.h.b16 %v162
  %v456 = vunpack.c.l.b16 %v163
  %v457 = vunpack.c.h.b16 %v163
  %v458 = vunpack.c.l.b16 %v164
  %v459 = vunpack.c.h.b16 %v164
  %v460 = vunpack.c.l.b16 %v165
  %v461 = vunpack.c.h.b16 %v165
  %v462 = vunpack.c.l.b16 %v166
  %v463 = vunpack.c.h.b16 %v166
  %v464 = vunpack.c.l.b16 %v167
  %v465 = vunpack.c.h.b16 %v167
  %v466 = vunpack.c.l.b16 %v168
  %v467 = vunpack.c.h.b16 %v168
  %v468 = vunpack.c.l.b16 %v169
  %v469 = vunpack.c.h.b16 %v169
  %v470 = vunpack.c.l.b16 %v170
  %v471 = vunpack.c.h.b16 %v170
  %v472 = vunpack.c.l.b16 %v171
  %v473 = vunpack.c.h.b16 %v171
  %v474 = vunpack.c.l.b16 %v172
  %v475 = vunpack.c.h.b16 %v172
  %v476 = vunpack.c.l.b16 %v173
  %v477 = vunpack.c.h.b16 %v173
  %v478 = vunpack.c.l.b16 %v174
  %v479 = vunpack.c.h.b16 %v174
  %v480 = vunpack.c.l.b16 %v175
  %v481 = vunpack.c.h.b16 %v175
  %v482 = vpack.c.b16 %v288, %v286
  %v483 = vpack.c.b16 %v289, %v287
  %v484 = vpack.c.b16 %v292, %v290
  %v485 = vpack.c.b16 %v293, %v291
  %v486 = vpack.c.b16 %v296, %v294
  %v487 = vpack.c.b16 %v297, %v295
  %v488 = vpack.c.b16 %v300, %v298
  %v489 = vpack.c.b16 %v301, %v299
  %v490 = vpack.c.b16 %v304, %v302
  %v491 = vpack.c.b16 %v305, %v303
  %v492 = vpack.c.b16 %v308, %v306
  %v493 = vpack.c.b16 %v309, %v307
  %v494 = vpack.c.b16 %v312, %v310
  %v495 = vpack.c.b16 %v313, %v311
  %v496 = vpack.c.b16 %v316, %v314
  %v497 = vpack.c.b16 %v317, %v315
  %v498 = vpack.c.b16 %v320, %v318
  %v499 = vpack.c.b16 %v321, %v319
  %v500 = vpack.c.b16 %v324, %v322
  %v501 = vpack.c.b16 %v325, %v323
  %v502 = vpack.c.b16 %v328, %v326
  %v503 = vpack.c.b16 %v329, %v327
  %v504 = vpack.c.b16 %v332, %v330
  %v505 = vpack.c.b16 %v333, %v331
  %v506 = vpack.c.b16 %v336, %v334
  %v507 = vpack.c.b16 %v337, %v335
  %v508 = vpack.c.b16 %v340, %v338
  %v509 = vpack.c.b16 %v341, %v339
  %v510 = vpack.c.b16 %v344, %v342
  %v511 = vpack.c.b16 %v345, %v343
  %v512 = vpack.c.b16 %v348, %v346
  %v513 = vpack.c.b16 %v349, %v347
  %v514 = vpack.c.b16 %v352, %v350
  %v515 = vpack.c.b16 %v353, %v351
  %v516 = vpack.c.b16 %v356, %v354
  %v517 = vpack.c.b16 %v357, %v355
  %v518 = vpack.c.b16 %v360, %v358
  %v519 = vpack.c.b16 %v361, %v359
  %v520 = vpack.c.b16 %v364, %v362
  %v521 = vpack.c.b16 %v365, %v363
  %v522 = vpack.c.b16 %v368, %v366
  %v523 = vpack.c.b16 %v369, %v367
  %v524 = vpack.c.b16 %v372, %v370
  %v525 = vpack.c.b16 %v373, %v371
  %v526 = vpack.c.b16 %v376, %v374
  %v527 = vpack.c.b16 %v377, %v375
  %v528 = vpack.c.b16 %v380, %v378
  %v529 = vpack.c.b16 %v381, %v379
  %v530 = vpack.c.b16 %v384, %v382
  %v531 = vpack.c.b16 %v385, %v383
  %v532 = vpack.c.b16 %v388, %v386
  %v533 = vpack.c.b16 %v389, %v387
  %v534 = vpack.c.b16 %v392, %v390
  %v535 = vpack.c.b16 %v393, %v391
  %v536 = vpack.c.b16 %v396, %v394
  %v537 = vpack.c.b16 %v397, %v395
  %v538 = vpack.c.b16 %v400, %v398
  %v539 = vpack.c.b16 %v401, %v399
  %v540 = vpack.c.b16 %v404, %v402
  %v541 = vpack.c.b16 %v405, %v403
  %v542 = vpack.c.b16 %v408, %v406
  %v543 = vpack.c.b16 %v409, %v407
  %v544 = vpack.c.b16 %v412, %v410
  %v545 = vpack.c.b16 %v413, %v411
  %v546 = vpack.c.b16 %v416, %v414
  %v547 = vpack.c.b16 %v417, %v415
  %v548 = vpack.c.b16 %v420, %v418
  %v549 = vpack.c.b16 %v421, %v419
  %v550 = vpack.c.b16 %v424, %v422
  %v551 = vpack.c.b16 %v425, %v423
  %v552 = vpack.c.b16 %v428, %v426
  %v553 = vpack.c.b16 %v429, %v427
  %v554 = vpack.c.b16 %v432, %v430
  %v555 = vpack.c.b16 %v433, %v431
  %v556 = vpack.c.b16 %v436, %v434
  %v557 = vpack.c.b16 %v437, %v435
  %v558 = vpack.c.b16 %v440, %v438
  %v559 = vpack.c.b16 %v441, %v439
  %v560 = vpack.c.b16 %v444, %v442
  %v561 = vpack.c.b16 %v445, %v443
  %v562 = vpack.c.b16 %v448, %v446
  %v563 = vpack.c.b16 %v449, %v447
  %v564 = vpack.c.b16 %v452, %v450
  %v565 = vpack.c.b16 %v453, %v451
  %v566 = vpack.c.b16 %v456, %v454
  %v567 = vpack.c.b16 %v457, %v455
  %v568 = vpack.c.b16 %v460, %v458
  %v569 = vpack.c.b16 %v461, %v459
  %v570 = vpack.c.b16 %v464, %v462
  %v571 = vpack.c.b16 %v465, %v463
  %v572 = vpack.c.b16 %v468, %v466
  %v573 = vpack.c.b16 %v469, %v467
  %v574 = vpack.c.b16 %v472, %v470
  %v575 = vpack.c.b16 %v473, %v471
  %v576 = vpack.c.b16 %v476, %v474
  %v577 = vpack.c.b16 %v477, %v475
  %v578 = vpack.c.b16 %v480, %v478
  %v579 = vpack.c.b16 %v481, %v479
  %vm678 = vcmask 130048
  %v680 = vsel %vm678, %v77, 0
  %682 = vmatprep.subr.bf16.mxu0 %v497
  %683 = vmatpush1.bf16.msra.mxu0 %v496
  %684 = vmatprep.subr.bf16.mxu0 %v495
  %685 = vmatpush1.bf16.msra.mxu0 %v494
  %686 = vmatprep.subr.bf16.mxu0 %v493
  %687 = vmatpush1.bf16.msra.mxu0 %v492
  %688 = vmatprep.subr.bf16.mxu0 %v491
  %689 = vmatpush1.bf16.msra.mxu0 %v490
  %690 = vmatprep.subr.bf16.mxu0 %v489
  %691 = vmatpush1.bf16.msra.mxu0 %v488
  %692 = vmatprep.subr.bf16.mxu0 %v487
  %693 = vmatpush1.bf16.msra.mxu0 %v486
  %694 = vmatprep.subr.bf16.mxu0 %v485
  %695 = vmatpush1.bf16.msra.mxu0 %v484
  %696 = vmatprep.subr.bf16.mxu0 %v483
  %697 = vmatpush1.bf16.msra.mxu0 %v482
  %698 = vmatprep.subr.bf16.mxu0 %v513
  %699 = vmatpush2.bf16.msra.mxu0 %v512
  %700 = vmatprep.subr.bf16.mxu0 %v511
  %701 = vmatpush2.bf16.msra.mxu0 %v510
  %702 = vmatprep.subr.bf16.mxu0 %v509
  %703 = vmatpush2.bf16.msra.mxu0 %v508
  %704 = vmatprep.subr.bf16.mxu0 %v507
  %705 = vmatpush2.bf16.msra.mxu0 %v506
  %706 = vmatprep.subr.bf16.mxu0 %v505
  %707 = vmatpush2.bf16.msra.mxu0 %v504
  %708 = vmatprep.subr.bf16.mxu0 %v503
  %709 = vmatpush2.bf16.msra.mxu0 %v502
  %710 = vmatprep.subr.bf16.mxu0 %v501
  %711 = vmatpush2.bf16.msra.mxu0 %v500
  %712 = vmatprep.subr.bf16.mxu0 %v499
  %713 = vmatpush2.bf16.msra.mxu0 %v498
  %714 = vmatprep.mubr.bf16.mxu0 %v72
  %715 = vmatmul.mubr.bf16.gmra.mxu0 %v71
  %v716 = vpop.f32.mrf.mxu0
  %v717 = vadd.f32 %v181, %v716
  %v718 = vpop.f32.mrf.mxu0
  %v719 = vadd.f32 %v185, %v718
  %v720 = vpop.f32.mrf.mxu0
  %v721 = vpop.f32.mrf.mxu0
  %722 = vdwg.mxu0
  %723 = vmatprep.subr.bf16.mxu0 %v529
  %724 = vmatpush1.bf16.msra.mxu0 %v528
  %725 = vmatprep.subr.bf16.mxu0 %v527
  %726 = vmatpush1.bf16.msra.mxu0 %v526
  %727 = vmatprep.subr.bf16.mxu0 %v525
  %728 = vmatpush1.bf16.msra.mxu0 %v524
  %729 = vmatprep.subr.bf16.mxu0 %v523
  %730 = vmatpush1.bf16.msra.mxu0 %v522
  %731 = vmatprep.subr.bf16.mxu0 %v521
  %732 = vmatpush1.bf16.msra.mxu0 %v520
  %733 = vmatprep.subr.bf16.mxu0 %v519
  %734 = vmatpush1.bf16.msra.mxu0 %v518
  %735 = vmatprep.subr.bf16.mxu0 %v517
  %736 = vmatpush1.bf16.msra.mxu0 %v516
  %737 = vmatprep.subr.bf16.mxu0 %v515
  %738 = vmatpush1.bf16.msra.mxu0 %v514
  %739 = vmatprep.subr.bf16.mxu0 %v545
  %740 = vmatpush2.bf16.msra.mxu0 %v544
  %741 = vmatprep.subr.bf16.mxu0 %v543
  %742 = vmatpush2.bf16.msra.mxu0 %v542
  %743 = vmatprep.subr.bf16.mxu0 %v541
  %744 = vmatpush2.bf16.msra.mxu0 %v540
  %745 = vmatprep.subr.bf16.mxu0 %v539
  %746 = vmatpush2.bf16.msra.mxu0 %v538
  %747 = vmatprep.subr.bf16.mxu0 %v537
  %748 = vmatpush2.bf16.msra.mxu0 %v536
  %749 = vmatprep.subr.bf16.mxu0 %v535
  %750 = vmatpush2.bf16.msra.mxu0 %v534
  %751 = vmatprep.subr.bf16.mxu0 %v533
  %752 = vmatpush2.bf16.msra.mxu0 %v532
  %753 = vmatprep.subr.bf16.mxu0 %v531
  %754 = vmatpush2.bf16.msra.mxu0 %v530
  %755 = vmatprep.mubr.bf16.mxu0 %v74
  %756 = vmatmul.mubr.bf16.gmra.mxu0 %v73
  %v757 = vpop.f32.mrf.mxu0
  %v758 = vadd.f32 %v717, %v757
  %v759 = vpop.f32.mrf.mxu0
  %v760 = vadd.f32 %v719, %v759
  %v761 = vpop.f32.mrf.mxu0
  %v762 = vpop.f32.mrf.mxu0
  %763 = vdwg.mxu0
  %764 = vmatprep.subr.bf16.mxu0 %v561
  %765 = vmatpush1.bf16.msra.mxu0 %v560
  %766 = vmatprep.subr.bf16.mxu0 %v559
  %767 = vmatpush1.bf16.msra.mxu0 %v558
  %768 = vmatprep.subr.bf16.mxu0 %v557
  %769 = vmatpush1.bf16.msra.mxu0 %v556
  %770 = vmatprep.subr.bf16.mxu0 %v555
  %771 = vmatpush1.bf16.msra.mxu0 %v554
  %772 = vmatprep.subr.bf16.mxu0 %v553
  %773 = vmatpush1.bf16.msra.mxu0 %v552
  %774 = vmatprep.subr.bf16.mxu0 %v551
  %775 = vmatpush1.bf16.msra.mxu0 %v550
  %776 = vmatprep.subr.bf16.mxu0 %v549
  %777 = vmatpush1.bf16.msra.mxu0 %v548
  %778 = vmatprep.subr.bf16.mxu0 %v547
  %779 = vmatpush1.bf16.msra.mxu0 %v546
  %780 = vmatprep.subr.bf16.mxu0 %v577
  %781 = vmatpush2.bf16.msra.mxu0 %v576
  %782 = vmatprep.subr.bf16.mxu0 %v575
  %783 = vmatpush2.bf16.msra.mxu0 %v574
  %784 = vmatprep.subr.bf16.mxu0 %v573
  %785 = vmatpush2.bf16.msra.mxu0 %v572
  %786 = vmatprep.subr.bf16.mxu0 %v571
  %787 = vmatpush2.bf16.msra.mxu0 %v570
  %788 = vmatprep.subr.bf16.mxu0 %v569
  %789 = vmatpush2.bf16.msra.mxu0 %v568
  %790 = vmatprep.subr.bf16.mxu0 %v567
  %791 = vmatpush2.bf16.msra.mxu0 %v566
  %792 = vmatprep.subr.bf16.mxu0 %v565
  %793 = vmatpush2.bf16.msra.mxu0 %v564
  %794 = vmatprep.subr.bf16.mxu0 %v563
  %795 = vmatpush2.bf16.msra.mxu0 %v562
  %796 = vmatprep.mubr.bf16.mxu0 %v76
  %797 = vmatmul.mubr.bf16.gmra.mxu0 %v75
  %v798 = vpop.f32.mrf.mxu0
  %v799 = vadd.f32 %v758, %v798
  %v800 = vpop.f32.mrf.mxu0
  %v801 = vadd.f32 %v760, %v800
  %v802 = vpop.f32.mrf.mxu0
  %v803 = vpop.f32.mrf.mxu0
  %804 = vdwg.mxu0
  %805 = vmatprep.subr.bf16.mxu0 0
  %806 = vmatpush1.bf16.msra.mxu0 0
  %807 = vmatprep.subr.bf16.mxu0 0
  %808 = vmatpush1.bf16.msra.mxu0 0
  %809 = vmatprep.subr.bf16.mxu0 0
  %810 = vmatpush1.bf16.msra.mxu0 0
  %811 = vmatprep.subr.bf16.mxu0 0
  %812 = vmatpush1.bf16.msra.mxu0 0
  %813 = vmatprep.subr.bf16.mxu0 0
  %814 = vmatpush1.bf16.msra.mxu0 0
  %815 = vmatprep.subr.bf16.mxu0 0
  %816 = vmatpush1.bf16.msra.mxu0 0
  %817 = vmatprep.subr.bf16.mxu0 0
  %818 = vmatpush1.bf16.msra.mxu0 0
  %819 = vmatprep.subr.bf16.mxu0 %v579
  %820 = vmatpush1.bf16.msra.mxu0 %v578
  %821 = vmatprep.subr.bf16.mxu0 0
  %822 = vmatpush2.bf16.msra.mxu0 0
  %823 = vmatprep.subr.bf16.mxu0 0
  %824 = vmatpush2.bf16.msra.mxu0 0
  %825 = vmatprep.subr.bf16.mxu0 0
  %826 = vmatpush2.bf16.msra.mxu0 0
  %827 = vmatprep.subr.bf16.mxu0 0
  %828 = vmatpush2.bf16.msra.mxu0 0
  %829 = vmatprep.subr.bf16.mxu0 0
  %830 = vmatpush2.bf16.msra.mxu0 0
  %831 = vmatprep.subr.bf16.mxu0 0
  %832 = vmatpush2.bf16.msra.mxu0 0
  %833 = vmatprep.subr.bf16.mxu0 0
  %834 = vmatpush2.bf16.msra.mxu0 0
  %835 = vmatprep.subr.bf16.mxu0 0
  %836 = vmatpush2.bf16.msra.mxu0 0
  %837 = vmatprep.mubr.bf16.mxu0 0
  %838 = vmatmul.mubr.bf16.gmra.mxu0 %v680
  %v839 = vpop.f32.mrf.mxu0
  %v840 = vadd.f32 %v799, %v839
  %v841 = vpop.f32.mrf.mxu0
  %v842 = vadd.f32 %v801, %v841
  %v843 = vpop.f32.mrf.mxu0
  %v844 = vpop.f32.mrf.mxu0
  %845 = vdwg.mxu0
  %v846 = vmax.f32 %v840, 0.0
  %v847 = vmax.f32 %v842, 0.0
  %v848 = vpack.c.bf16 %v846, %v846
  %v849 = vpack.c.bf16 %v847, %v847
  %v850 = vld [vmem:[%s3] sm:$0xff]
  %v851 = vld [vmem:[%s3 + $0x8] sm:$0xff]
  %v852 = vld [vmem:[%s3 + $0x10] sm:$0xff]
  %v853 = vld [vmem:[%s3 + $0x18] sm:$0xff]
  %v854 = vld [vmem:[%s3 + $0x20] sm:$0xff]
  %v855 = vld [vmem:[%s3 + $0x28] sm:$0xff]
  %v856 = vld [vmem:[%s3 + $0x30] sm:$0xff]
  %v857 = vld [vmem:[%s3 + $0x38] sm:$0xff]
  %v858 = vld [vmem:[%s3 + $0x40] sm:$0xff]
  %v859 = vld [vmem:[%s3 + $0x48] sm:$0xff]
  %v860 = vld [vmem:[%s3 + $0x50] sm:$0xff]
  %v861 = vld [vmem:[%s3 + $0x58] sm:$0xff]
  %v862 = vld [vmem:[%s3 + $0x60] sm:$0xff]
  %v863 = vld [vmem:[%s3 + $0x68] sm:$0xff]
  %v864 = vld [vmem:[%s3 + $0x70] sm:$0xff]
  %v865 = vld [vmem:[%s3 + $0x78] sm:$0xff]
  %v866 = vld [vmem:[%s3 + $0x80] sm:$0xff]
  %v867 = vld [vmem:[%s3 + $0x88] sm:$0xff]
  %v868 = vld [vmem:[%s3 + $0x90] sm:$0xff]
  %v869 = vld [vmem:[%s3 + $0x98] sm:$0xff]
  %v870 = vld [vmem:[%s3 + $0xa0] sm:$0xff]
  %v871 = vld [vmem:[%s3 + $0xa8] sm:$0xff]
  %v872 = vld [vmem:[%s3 + $0xb0] sm:$0xff]
  %v873 = vld [vmem:[%s3 + $0xb8] sm:$0xff]
  %v874 = vld [vmem:[%s3 + $0xc0] sm:$0xff]
  %v875 = vld [vmem:[%s3 + $0xc8] sm:$0xff]
  %v876 = vld [vmem:[%s3 + $0xd0] sm:$0xff]
  %v877 = vld [vmem:[%s3 + $0xd8] sm:$0xff]
  %v878 = vld [vmem:[%s3 + $0xe0] sm:$0xff]
  %v879 = vld [vmem:[%s3 + $0xe8] sm:$0xff]
  %v880 = vld [vmem:[%s3 + $0xf0] sm:$0xff]
  %v881 = vld [vmem:[%s3 + $0xf8] sm:$0xff]
  %v882 = vld [vmem:[%s4] sm:$0x3]
  %v884 = vlaneseq
  %v885 = vshrl.u32 %v884, 7
  %v886 = vsub.s32 0, %v885
  %v887 = vrot.slane %v882, %v886
  %v888 = vlaneseq
  %v889 = vshrl.u32 %v888, 7
  %v890 = vsub.s32 1, %v889
  %v891 = vrot.slane %v882, %v890
  %v926 = vunpack.c.l.b16 %v850
  %v927 = vunpack.c.h.b16 %v850
  %v928 = vunpack.c.l.b16 %v851
  %v929 = vunpack.c.h.b16 %v851
  %v930 = vunpack.c.l.b16 %v852
  %v931 = vunpack.c.h.b16 %v852
  %v932 = vunpack.c.l.b16 %v853
  %v933 = vunpack.c.h.b16 %v853
  %v934 = vunpack.c.l.b16 %v854
  %v935 = vunpack.c.h.b16 %v854
  %v936 = vunpack.c.l.b16 %v855
  %v937 = vunpack.c.h.b16 %v855
  %v938 = vunpack.c.l.b16 %v856
  %v939 = vunpack.c.h.b16 %v856
  %v940 = vunpack.c.l.b16 %v857
  %v941 = vunpack.c.h.b16 %v857
  %v942 = vunpack.c.l.b16 %v858
  %v943 = vunpack.c.h.b16 %v858
  %v944 = vunpack.c.l.b16 %v859
  %v945 = vunpack.c.h.b16 %v859
  %v946 = vunpack.c.l.b16 %v860
  %v947 = vunpack.c.h.b16 %v860
  %v948 = vunpack.c.l.b16 %v861
  %v949 = vunpack.c.h.b16 %v861
  %v950 = vunpack.c.l.b16 %v862
  %v951 = vunpack.c.h.b16 %v862
  %v952 = vunpack.c.l.b16 %v863
  %v953 = vunpack.c.h.b16 %v863
  %v954 = vunpack.c.l.b16 %v864
  %v955 = vunpack.c.h.b16 %v864
  %v956 = vunpack.c.l.b16 %v865
  %v957 = vunpack.c.h.b16 %v865
  %v958 = vunpack.c.l.b16 %v866
  %v959 = vunpack.c.h.b16 %v866
  %v960 = vunpack.c.l.b16 %v867
  %v961 = vunpack.c.h.b16 %v867
  %v962 = vunpack.c.l.b16 %v868
  %v963 = vunpack.c.h.b16 %v868
  %v964 = vunpack.c.l.b16 %v869
  %v965 = vunpack.c.h.b16 %v869
  %v966 = vunpack.c.l.b16 %v870
  %v967 = vunpack.c.h.b16 %v870
  %v968 = vunpack.c.l.b16 %v871
  %v969 = vunpack.c.h.b16 %v871
  %v970 = vunpack.c.l.b16 %v872
  %v971 = vunpack.c.h.b16 %v872
  %v972 = vunpack.c.l.b16 %v873
  %v973 = vunpack.c.h.b16 %v873
  %v974 = vunpack.c.l.b16 %v874
  %v975 = vunpack.c.h.b16 %v874
  %v976 = vunpack.c.l.b16 %v875
  %v977 = vunpack.c.h.b16 %v875
  %v978 = vunpack.c.l.b16 %v876
  %v979 = vunpack.c.h.b16 %v876
  %v980 = vunpack.c.l.b16 %v877
  %v981 = vunpack.c.h.b16 %v877
  %v982 = vunpack.c.l.b16 %v878
  %v983 = vunpack.c.h.b16 %v878
  %v984 = vunpack.c.l.b16 %v879
  %v985 = vunpack.c.h.b16 %v879
  %v986 = vunpack.c.l.b16 %v880
  %v987 = vunpack.c.h.b16 %v880
  %v988 = vunpack.c.l.b16 %v881
  %v989 = vunpack.c.h.b16 %v881
  %v990 = vpack.c.b16 %v928, %v926
  %v991 = vpack.c.b16 %v929, %v927
  %v992 = vpack.c.b16 %v932, %v930
  %v993 = vpack.c.b16 %v933, %v931
  %v994 = vpack.c.b16 %v936, %v934
  %v995 = vpack.c.b16 %v937, %v935
  %v996 = vpack.c.b16 %v940, %v938
  %v997 = vpack.c.b16 %v941, %v939
  %v998 = vpack.c.b16 %v944, %v942
  %v999 = vpack.c.b16 %v945, %v943
  %v1000 = vpack.c.b16 %v948, %v946
  %v1001 = vpack.c.b16 %v949, %v947
  %v1002 = vpack.c.b16 %v952, %v950
  %v1003 = vpack.c.b16 %v953, %v951
  %v1004 = vpack.c.b16 %v956, %v954
  %v1005 = vpack.c.b16 %v957, %v955
  %v1006 = vpack.c.b16 %v960, %v958
  %v1007 = vpack.c.b16 %v961, %v959
  %v1008 = vpack.c.b16 %v964, %v962
  %v1009 = vpack.c.b16 %v965, %v963
  %v1010 = vpack.c.b16 %v968, %v966
  %v1011 = vpack.c.b16 %v969, %v967
  %v1012 = vpack.c.b16 %v972, %v970
  %v1013 = vpack.c.b16 %v973, %v971
  %v1014 = vpack.c.b16 %v976, %v974
  %v1015 = vpack.c.b16 %v977, %v975
  %v1016 = vpack.c.b16 %v980, %v978
  %v1017 = vpack.c.b16 %v981, %v979
  %v1018 = vpack.c.b16 %v984, %v982
  %v1019 = vpack.c.b16 %v985, %v983
  %v1020 = vpack.c.b16 %v988, %v986
  %v1021 = vpack.c.b16 %v989, %v987
  %1054 = vmatprep.subr.bf16.mxu0 %v1005
  %1055 = vmatpush1.bf16.msra.mxu0 %v1004
  %1056 = vmatprep.subr.bf16.mxu0 %v1003
  %1057 = vmatpush1.bf16.msra.mxu0 %v1002
  %1058 = vmatprep.subr.bf16.mxu0 %v1001
  %1059 = vmatpush1.bf16.msra.mxu0 %v1000
  %1060 = vmatprep.subr.bf16.mxu0 %v999
  %1061 = vmatpush1.bf16.msra.mxu0 %v998
  %1062 = vmatprep.subr.bf16.mxu0 %v997
  %1063 = vmatpush1.bf16.msra.mxu0 %v996
  %1064 = vmatprep.subr.bf16.mxu0 %v995
  %1065 = vmatpush1.bf16.msra.mxu0 %v994
  %1066 = vmatprep.subr.bf16.mxu0 %v993
  %1067 = vmatpush1.bf16.msra.mxu0 %v992
  %1068 = vmatprep.subr.bf16.mxu0 %v991
  %1069 = vmatpush1.bf16.msra.mxu0 %v990
  %1070 = vmatprep.subr.bf16.mxu0 %v1021
  %1071 = vmatpush2.bf16.msra.mxu0 %v1020
  %1072 = vmatprep.subr.bf16.mxu0 %v1019
  %1073 = vmatpush2.bf16.msra.mxu0 %v1018
  %1074 = vmatprep.subr.bf16.mxu0 %v1017
  %1075 = vmatpush2.bf16.msra.mxu0 %v1016
  %1076 = vmatprep.subr.bf16.mxu0 %v1015
  %1077 = vmatpush2.bf16.msra.mxu0 %v1014
  %1078 = vmatprep.subr.bf16.mxu0 %v1013
  %1079 = vmatpush2.bf16.msra.mxu0 %v1012
  %1080 = vmatprep.subr.bf16.mxu0 %v1011
  %1081 = vmatpush2.bf16.msra.mxu0 %v1010
  %1082 = vmatprep.subr.bf16.mxu0 %v1009
  %1083 = vmatpush2.bf16.msra.mxu0 %v1008
  %1084 = vmatprep.subr.bf16.mxu0 %v1007
  %1085 = vmatpush2.bf16.msra.mxu0 %v1006
  %1086 = vmatprep.mubr.bf16.mxu0 %v849
  %1087 = vmatmul.mubr.bf16.gmra.mxu0 %v848
  %v1088 = vpop.f32.mrf.mxu0
  %v1089 = vadd.f32 %v887, %v1088
  %v1090 = vpop.f32.mrf.mxu0
  %v1091 = vadd.f32 %v891, %v1090
  %v1092 = vpop.f32.mrf.mxu0
  %v1093 = vpop.f32.mrf.mxu0
  %1094 = vdwg.mxu0
  %v1095 = vmax.f32 %v1089, 0.0
  %v1096 = vmax.f32 %v1091, 0.0
  %v1097 = vpack.c.bf16 %v1095, %v1095
  %v1098 = vpack.c.bf16 %v1096, %v1096
  %v1099 = vld [vmem:[%s5] sm:$0xf]
  %v1100 = vld [vmem:[%s5 + $0x4] sm:$0xf]
  %v1101 = vld [vmem:[%s5 + $0x8] sm:$0xf]
  %v1102 = vld [vmem:[%s5 + $0xc] sm:$0xf]
  %v1103 = vld [vmem:[%s5 + $0x10] sm:$0xf]
  %v1104 = vld [vmem:[%s5 + $0x14] sm:$0xf]
  %v1105 = vld [vmem:[%s5 + $0x18] sm:$0xf]
  %v1106 = vld [vmem:[%s5 + $0x1c] sm:$0xf]
  %v1107 = vld [vmem:[%s5 + $0x20] sm:$0xf]
  %v1108 = vld [vmem:[%s5 + $0x24] sm:$0xf]
  %v1109 = vld [vmem:[%s5 + $0x28] sm:$0xf]
  %v1110 = vld [vmem:[%s5 + $0x2c] sm:$0xf]
  %v1111 = vld [vmem:[%s5 + $0x30] sm:$0xf]
  %v1112 = vld [vmem:[%s5 + $0x34] sm:$0xf]
  %v1113 = vld [vmem:[%s5 + $0x38] sm:$0xf]
  %v1114 = vld [vmem:[%s5 + $0x3c] sm:$0xf]
  %v1115 = vld [vmem:[%s5 + $0x40] sm:$0xf]
  %v1116 = vld [vmem:[%s5 + $0x44] sm:$0xf]
  %v1117 = vld [vmem:[%s5 + $0x48] sm:$0xf]
  %v1118 = vld [vmem:[%s5 + $0x4c] sm:$0xf]
  %v1119 = vld [vmem:[%s5 + $0x50] sm:$0xf]
  %v1120 = vld [vmem:[%s5 + $0x54] sm:$0xf]
  %v1121 = vld [vmem:[%s5 + $0x58] sm:$0xf]
  %v1122 = vld [vmem:[%s5 + $0x5c] sm:$0xf]
  %v1123 = vld [vmem:[%s5 + $0x60] sm:$0xf]
  %v1124 = vld [vmem:[%s5 + $0x64] sm:$0xf]
  %v1125 = vld [vmem:[%s5 + $0x68] sm:$0xf]
  %v1126 = vld [vmem:[%s5 + $0x6c] sm:$0xf]
  %v1127 = vld [vmem:[%s5 + $0x70] sm:$0xf]
  %v1128 = vld [vmem:[%s5 + $0x74] sm:$0xf]
  %v1129 = vld [vmem:[%s5 + $0x78] sm:$0xf]
  %v1130 = vld [vmem:[%s5 + $0x7c] sm:$0xf]
  %v1131 = vld [vmem:[%s6] sm:$0x1]
  %v1133 = vlaneseq
  %v1134 = vshrl.u32 %v1133, 7
  %v1135 = vsub.s32 0, %v1134
  %v1136 = vrot.slane %v1131, %v1135
  %v1170 = vunpack.c.l.b16 %v1099
  %v1171 = vunpack.c.l.b16 %v1100
  %v1172 = vunpack.c.l.b16 %v1101
  %v1173 = vunpack.c.l.b16 %v1102
  %v1174 = vunpack.c.l.b16 %v1103
  %v1175 = vunpack.c.l.b16 %v1104
  %v1176 = vunpack.c.l.b16 %v1105
  %v1177 = vunpack.c.l.b16 %v1106
  %v1178 = vunpack.c.l.b16 %v1107
  %v1179 = vunpack.c.l.b16 %v1108
  %v1180 = vunpack.c.l.b16 %v1109
  %v1181 = vunpack.c.l.b16 %v1110
  %v1182 = vunpack.c.l.b16 %v1111
  %v1183 = vunpack.c.l.b16 %v1112
  %v1184 = vunpack.c.l.b16 %v1113
  %v1185 = vunpack.c.l.b16 %v1114
  %v1186 = vunpack.c.l.b16 %v1115
  %v1187 = vunpack.c.l.b16 %v1116
  %v1188 = vunpack.c.l.b16 %v1117
  %v1189 = vunpack.c.l.b16 %v1118
  %v1190 = vunpack.c.l.b16 %v1119
  %v1191 = vunpack.c.l.b16 %v1120
  %v1192 = vunpack.c.l.b16 %v1121
  %v1193 = vunpack.c.l.b16 %v1122
  %v1194 = vunpack.c.l.b16 %v1123
  %v1195 = vunpack.c.l.b16 %v1124
  %v1196 = vunpack.c.l.b16 %v1125
  %v1197 = vunpack.c.l.b16 %v1126
  %v1198 = vunpack.c.l.b16 %v1127
  %v1199 = vunpack.c.l.b16 %v1128
  %v1200 = vunpack.c.l.b16 %v1129
  %v1201 = vunpack.c.l.b16 %v1130
  %v1202 = vpack.c.b16 %v1171, %v1170
  %v1203 = vpack.c.b16 %v1173, %v1172
  %v1204 = vpack.c.b16 %v1175, %v1174
  %v1205 = vpack.c.b16 %v1177, %v1176
  %v1206 = vpack.c.b16 %v1179, %v1178
  %v1207 = vpack.c.b16 %v1181, %v1180
  %v1208 = vpack.c.b16 %v1183, %v1182
  %v1209 = vpack.c.b16 %v1185, %v1184
  %v1210 = vpack.c.b16 %v1187, %v1186
  %v1211 = vpack.c.b16 %v1189, %v1188
  %v1212 = vpack.c.b16 %v1191, %v1190
  %v1213 = vpack.c.b16 %v1193, %v1192
  %v1214 = vpack.c.b16 %v1195, %v1194
  %v1215 = vpack.c.b16 %v1197, %v1196
  %v1216 = vpack.c.b16 %v1199, %v1198
  %v1217 = vpack.c.b16 %v1201, %v1200
  %1234 = vmatprep.subr.bf16.mxu0 0
  %1235 = vmatpush1.bf16.msra.mxu0 %v1209
  %1236 = vmatprep.subr.bf16.mxu0 0
  %1237 = vmatpush1.bf16.msra.mxu0 %v1208
  %1238 = vmatprep.subr.bf16.mxu0 0
  %1239 = vmatpush1.bf16.msra.mxu0 %v1207
  %1240 = vmatprep.subr.bf16.mxu0 0
  %1241 = vmatpush1.bf16.msra.mxu0 %v1206
  %1242 = vmatprep.subr.bf16.mxu0 0
  %1243 = vmatpush1.bf16.msra.mxu0 %v1205
  %1244 = vmatprep.subr.bf16.mxu0 0
  %1245 = vmatpush1.bf16.msra.mxu0 %v1204
  %1246 = vmatprep.subr.bf16.mxu0 0
  %1247 = vmatpush1.bf16.msra.mxu0 %v1203
  %1248 = vmatprep.subr.bf16.mxu0 0
  %1249 = vmatpush1.bf16.msra.mxu0 %v1202
  %1250 = vmatprep.subr.bf16.mxu0 0
  %1251 = vmatpush2.bf16.msra.mxu0 %v1217
  %1252 = vmatprep.subr.bf16.mxu0 0
  %1253 = vmatpush2.bf16.msra.mxu0 %v1216
  %1254 = vmatprep.subr.bf16.mxu0 0
  %1255 = vmatpush2.bf16.msra.mxu0 %v1215
  %1256 = vmatprep.subr.bf16.mxu0 0
  %1257 = vmatpush2.bf16.msra.mxu0 %v1214
  %1258 = vmatprep.subr.bf16.mxu0 0
  %1259 = vmatpush2.bf16.msra.mxu0 %v1213
  %1260 = vmatprep.subr.bf16.mxu0 0
  %1261 = vmatpush2.bf16.msra.mxu0 %v1212
  %1262 = vmatprep.subr.bf16.mxu0 0
  %1263 = vmatpush2.bf16.msra.mxu0 %v1211
  %1264 = vmatprep.subr.bf16.mxu0 0
  %1265 = vmatpush2.bf16.msra.mxu0 %v1210
  %1266 = vmatprep.mubr.bf16.mxu0 %v1098
  %1267 = vmatmul.mubr.bf16.gmra.mxu0 %v1097
  %v1268 = vpop.f32.mrf.mxu0
  %v1269 = vadd.f32 %v1136, %v1268
  %v1270 = vpop.f32.mrf.mxu0
  %v1271 = vpop.f32.mrf.mxu0
  %v1272 = vpop.f32.mrf.mxu0
  %1273 = vdwg.mxu0
  %v1274 = vpack.c.bf16 %v1269, %v1269
  %1275 = vst [vmem:[%s7] sm:$0x1] %v1274
  // Predicated region
  $region30: #{mlp_forward.1} parent=0 // pred_check
    _
  $region31: #{mlp_forward.1} parent=0 // pred_check_branch
    %1277 = sbr.rel (0) target = $region33
  $region32: #{mlp_forward.1} parent=0 // pred_region
    _
  $region33: #{mlp_forward.1} parent=0 // pred_fallthru
    _
  // Predicated region
  $region34: #{mlp_forward.1} parent=0 // pred_check
    _
  $region35: #{mlp_forward.1} parent=0 // pred_check_branch
    %1279 = sbr.rel (0) target = $region37
  $region36: #{mlp_forward.1} parent=0 // pred_region
    _
  $region37: #{mlp_forward.1} parent=0 // pred_fallthru
    _

</llo_original>
